<compile_context>
chip_gen: v5e
topology: v5e:2x2
jax: 0.10.0
libtpu: 0.0.40
codegen_flags: <defaults>
</compile_context>

<pallas_src>
import functools

import jax
import jax.numpy as jnp
from jax import lax
from jax.experimental import pallas as pl
from jax.experimental.pallas import tpu as pltpu

_LANE = 128
_SUBLANE = 8
_HW_TILE_MAX = 2048                     # 2048 f32 lanes = 8 KiB per row slice
_BLOCK_BYTES_TARGET = 4 << 20           # ~4 MiB f32 input block per grid step


def _round_up(a: int, b: int) -> int:
    return -(-a // b) * b


def _ceil_div(a: int, b: int) -> int:
    return -(-a // b)


def _pow_int(x, p):
    """x**p with integer p as repeated VPU multiplies (no EUP transcendentals)."""
    p_int = int(round(p))
    if p == float(p_int) and p_int >= 1:
        y = x
        for _ in range(p_int - 1):
            y = y * x
        return y
    return x ** p                        # generic fallback (EUP) for non-integer p


def _gem_kernel_single(x_ref, o_ref, *, p, eps, inv_hw, inv_p):
    """Fast path: the whole H*W extent fits one block — no accumulator scratch.

    x_ref: (tile_rows, hw) input block; o_ref: (tile_rows, 1) output block.
    """
    x = jnp.maximum(x_ref[...].astype(jnp.float32), eps)   # clamp(min=eps)
    s = jnp.sum(_pow_int(x, p), axis=-1, keepdims=True)
    o_ref[...] = ((s * inv_hw) ** inv_p).astype(o_ref.dtype)


def _gem_kernel_multi(x_ref, o_ref, acc_ref, *, p, eps, hw, tile_hw, mask_hw,
                      inv_hw, inv_p):
    """General path: H*W is tiled along a trailing 'arbitrary' reduction axis.

    x_ref:   (tile_rows, tile_hw) input block in VMEM
    o_ref:   (tile_rows, 1) output block (written on the last hw step)
    acc_ref: (tile_rows, 1) f32 running sum of clamp(x, eps)**p over H*W
    """
    k = pl.program_id(1)

    @pl.when(k == 0)
    def _init():
        acc_ref[...] = jnp.zeros_like(acc_ref)

    x = jnp.maximum(x_ref[...].astype(jnp.float32), eps)
    xp = _pow_int(x, p)

    if mask_hw:
        # Zero out zero-padded spatial columns so they don't bias the mean.
        col = k * tile_hw + lax.broadcasted_iota(jnp.int32, xp.shape, 1)
        xp = jnp.where(col < hw, xp, 0.0)

    acc_ref[...] += jnp.sum(xp, axis=-1, keepdims=True)

    @pl.when(k == pl.num_programs(1) - 1)
    def _finalize():
        o_ref[...] = ((acc_ref[...] * inv_hw) ** inv_p).astype(o_ref.dtype)


@functools.partial(jax.jit, static_argnames=("p", "eps"))
def gem_pallas(x, p=3.0, eps=1e-6):
    """GeM pooling. x: (N, C, H, W) -> (N, C, 1, 1)."""
    N, C, H, W = x.shape
    rows, hw = N * C, H * W
    x2 = x.reshape(rows, hw)

    # ---- hw (reduction) axis tiling: single full block if it fits, otherwise
    # the smallest number of 128-multiple tiles (bounds padding to <128 cols).
    if hw <= _HW_TILE_MAX:
        n_hw, tile_hw, hw_p = 1, hw, hw
    else:
        n_hw = _ceil_div(hw, _HW_TILE_MAX)
        tile_hw = _round_up(_ceil_div(hw, n_hw), _LANE)
        hw_p = tile_hw * n_hw

    # ---- row (parallel) axis tiling: ~4 MiB f32 per input block, padding
    # bounded to <128 rows per tile via cdiv-based tile choice.
    if rows <= _LANE:
        n_row = 1
        tile_rows = _round_up(rows, _SUBLANE)
    else:
        target = (_BLOCK_BYTES_TARGET // (tile_hw * 4)) // _LANE * _LANE
        target = max(_LANE, min(8192, target))
        n_row = _ceil_div(rows, target)
        tile_rows = _round_up(_ceil_div(rows, n_row), _LANE)
    rows_p = tile_rows * n_row

    if (rows_p, hw_p) != (rows, hw):
        x2 = jnp.pad(x2, ((0, rows_p - rows), (0, hw_p - hw)))

    inv_hw = 1.0 / float(hw)             # avg_pool2d over (H, W)
    inv_p = 1.0 / float(p)

    if n_hw == 1:
        kernel = functools.partial(
            _gem_kernel_single, p=float(p), eps=float(eps),
            inv_hw=inv_hw, inv_p=inv_p)
        grid = (n_row,)
        in_specs = [pl.BlockSpec((tile_rows, tile_hw), lambda i: (i, 0))]
        out_specs = pl.BlockSpec((tile_rows, 1), lambda i: (i, 0))
        scratch_shapes = []
        dims = ("parallel",)
    else:
        kernel = functools.partial(
            _gem_kernel_multi, p=float(p), eps=float(eps),
            hw=hw, tile_hw=tile_hw, mask_hw=(hw_p != hw),
            inv_hw=inv_hw, inv_p=inv_p)
        grid = (n_row, n_hw)              # reduction axis last
        in_specs = [pl.BlockSpec((tile_rows, tile_hw), lambda i, k: (i, k))]
        out_specs = pl.BlockSpec((tile_rows, 1), lambda i, k: (i, 0))
        scratch_shapes = [pltpu.VMEM((tile_rows, 1), jnp.float32)]
        dims = ("parallel", "arbitrary")

    out = pl.pallas_call(
        kernel,
        out_shape=jax.ShapeDtypeStruct((rows_p, 1), x.dtype),
        grid_spec=pltpu.PrefetchScalarGridSpec(
            num_scalar_prefetch=0,
            grid=grid,
            in_specs=in_specs,
            out_specs=out_specs,
            scratch_shapes=scratch_shapes,
        ),
        compiler_params=pltpu.CompilerParams(dimension_semantics=dims),
    )(x2)

    return out[:rows].reshape(N, C, 1, 1)


def gem_reference(x, p=3.0, eps=1e-6):
    xc = jnp.maximum(x, eps) ** p
    return jnp.mean(xc, axis=(-2, -1), keepdims=True) ** (1.0 / p)


if __name__ == "__main__":
    # GeM module with p_trainable=False: p is a plain scalar (3), eps=1e-6.
    p, eps = 3.0, 1e-6

    key = jax.random.PRNGKey(0)
    x = jax.random.normal(key, (2, 4, 16, 16), dtype=jnp.float32)

    out = gem_pallas(x, p=p, eps=eps)
    out = jax.block_until_ready(out)

    ref = gem_reference(x, p=p, eps=eps)
    assert out.shape == (2, 4, 1, 1), out.shape
    assert jnp.allclose(out, ref, atol=1e-5, rtol=1e-5), "mismatch vs reference"

    print("KERNEL_OK")
</pallas_src>

<mosaic_0001>
module attributes {stable_mosaic.version = 11 : i64} {
  func.func @_gem_kernel_single(%arg0: i32, %arg1: memref<8x256xf32, #tpu.memory_space<vmem>>, %arg2: memref<8x1xf32, #tpu.memory_space<vmem>>) attributes {dimension_semantics = [#tpu.dimension_semantics<parallel>], iteration_bounds = array<i64: 1>, scalar_prefetch = 0 : i64, scratch_operands = 0 : i64, tpu.core_type = #tpu.core_type<tc>, window_params = [{transform_indices = @transform_0, window_bounds = array<i64: 8, 256>}, {transform_indices = @transform_1, window_bounds = array<i64: 8, 1>}]} {
    %c0 = arith.constant 0 : index
    %c0_0 = arith.constant 0 : index
    %0 = vector.load %arg1[%c0, %c0_0] : memref<8x256xf32, #tpu.memory_space<vmem>>, vector<8x256xf32>
    %cst = arith.constant 9.99999997E-7 : f32
    %1 = vector.broadcast %cst : f32 to vector<8x256xf32>
    %2 = arith.maximumf %0, %1 : vector<8x256xf32>
    %3 = arith.mulf %2, %2 : vector<8x256xf32>
    %4 = arith.mulf %3, %2 : vector<8x256xf32>
    %cst_1 = arith.constant dense<0.000000e+00> : vector<8xf32>
    %5 = vector.multi_reduction <add>, %4, %cst_1 [1] : vector<8x256xf32> to vector<8xf32>
    %6 = vector.shape_cast %5 : vector<8xf32> to vector<8x1xf32>
    %cst_2 = arith.constant 3.906250e-03 : f32
    %7 = vector.broadcast %cst_2 : f32 to vector<8x1xf32>
    %8 = arith.mulf %6, %7 : vector<8x1xf32>
    %cst_3 = arith.constant 0.333333343 : f32
    %9 = vector.broadcast %cst_3 : f32 to vector<8x1xf32>
    %10 = math.powf %8, %9 : vector<8x1xf32>
    %c0_4 = arith.constant 0 : index
    %c0_5 = arith.constant 0 : index
    %11 = vector.load %arg2[%c0_4, %c0_5] : memref<8x1xf32, #tpu.memory_space<vmem>>, vector<8x1xf32>
    tpu.vector_store %arg2[%c0_4, %c0_5], %10 {strides = array<i32>} : memref<8x1xf32, #tpu.memory_space<vmem>>, vector<8x1xf32>,
    return
  }
  func.func @transform_0(%arg0: i32) -> (i32, i32) {
    %c0_i32 = arith.constant 0 : i32
    %c0_i32_0 = arith.constant 0 : i32
    return %arg0, %c0_i32 : i32, i32
  }
  func.func @transform_1(%arg0: i32) -> (i32, i32) {
    %c0_i32 = arith.constant 0 : i32
    %c0_i32_0 = arith.constant 0 : i32
    return %arg0, %c0_i32 : i32, i32
  }
}

</mosaic_0001>

<llo_original>
// kernel: gem_pallas.1
$region0: #{gem_pallas.1}
  #allocation0 [shape = 'u32[]', space=smem, size = 0x4, offset = 0x4, fixed_abs, tag = 'smem constant byte address 0x4 - core index']
  #allocation1 [shape = 'u32[72,128]{1,0:T(1,128)}', space=vmem, size = 0x9000, scoped, tag = 'internal scratch']
  %s0 = inlined_call_operand.vmem [shape: f32[8,256], index: 0, kind: input, shape index: {}]
  %s1 = inlined_call_operand.vmem [shape: f32[8,1], index: 1, kind: output, shape index: {}]
  %s2 = sld [smem:[#allocation0]]
  $region14: #{gem_pallas.1} parent=0
    _
  %s4 = ssub.s32 1, %s2
  %s5 = scalar_select 0, %s4, %s2
  // Predicated region
  $region2: #{gem_pallas.1} parent=0 // pred_check
    _
  $region3: #{gem_pallas.1} parent=0 // pred_check_branch
    %7 = sbr.rel (0) target = $region5
  $region4: #{gem_pallas.1} parent=0 // pred_region
    _
  $region5: #{gem_pallas.1} parent=0 // pred_fallthru
    _
  %v8 = vld [vmem:[%s0] sm:$0xff]
  %v9 = vld [vmem:[%s0 + $0x8] sm:$0xff]
  %v10 = vmax.f32 %v8, 1e-06
  %v11 = vmax.f32 %v9, 1e-06
  %v12 = vmul.f32 %v10, %v10
  %v13 = vmul.f32 %v11, %v11
  %v14 = vmul.f32 %v12, %v10
  %v15 = vmul.f32 %v13, %v11
  %v16 = vadd.f32 %v14, %v15
  %17 = vadd.xlane.f32.xlu0 %v16
  %v18 = vpop.xlane.xlu0 %17
  %v19 = vmul.f32 %v18, 0.00390625
  %v20 = vpow.f32 %v19, 0.33333334
  %vm21 = vcmask 7168
  %22 = vst.msk [vmem:[%s1] sm:$0xff] %vm21, %v20
  // Predicated region
  $region6: #{gem_pallas.1} parent=0 // pred_check
    _
  $region7: #{gem_pallas.1} parent=0 // pred_check_branch
    %24 = sbr.rel (0) target = $region9
  $region8: #{gem_pallas.1} parent=0 // pred_region
    _
  $region9: #{gem_pallas.1} parent=0 // pred_fallthru
    _
  // Predicated region
  $region10: #{gem_pallas.1} parent=0 // pred_check
    _
  $region11: #{gem_pallas.1} parent=0 // pred_check_branch
    %26 = sbr.rel (0) target = $region13
  $region12: #{gem_pallas.1} parent=0 // pred_region
    _
  $region13: #{gem_pallas.1} parent=0 // pred_fallthru
    _

</llo_original>
